<compile_context>
chip_gen: v7x
topology: tpu7x:2x2x1
jax: 0.10.0
libtpu: 0.0.40
codegen_flags: <defaults>
</compile_context>

<pallas_src>
import math

import jax
import jax.numpy as jnp
from jax import lax
from jax.experimental import pallas as pl
from jax.experimental.pallas import tpu as pltpu


# ---------------------------------------------------------------------------
# Tiling helpers
# ---------------------------------------------------------------------------
def _round_up(x, m):
    return ((x + m - 1) // m) * m


def _row_tile(dim, cap):
    """Row (sublane) tile: multiple of 8, <= cap, chosen to minimize padding."""
    n_tiles = max(1, math.ceil(dim / cap))
    t = _round_up(math.ceil(dim / n_tiles), 8)
    return min(t, _round_up(cap, 8))


def _lane_tile(dim, cap):
    """Lane tile: full dim, or a multiple-of-128 divisor of dim that is <= cap."""
    if dim <= cap or dim % 128 != 0:
        return dim
    t = (cap // 128) * 128
    while t >= 128:
        if dim % t == 0:
            return t
        t -= 128
    return dim


def _mosaic_params(semantics, est_vmem_bytes):
    # Explicit scoped-VMEM limit (v5e default is only 16 MiB); capped so it
    # stays legal on v7x (64 MiB physical VMEM per TensorCore).
    limit = int(max(32 * 1024 * 1024, min(2 * est_vmem_bytes, 56 * 1024 * 1024)))
    return pltpu.CompilerParams(dimension_semantics=semantics,
                                vmem_limit_bytes=limit)


# ---------------------------------------------------------------------------
# Fused multi-projection kernel:  Y_i = X @ W_i  (bias-free Linear, bf16 MXU)
# One kernel computes 1..3 projections from the SAME X tile, so the
# activations are read from HBM once (fused QKV / fused KV) and the outputs
# come back as separate arrays (no packed-activation slicing in the wrapper).
# ---------------------------------------------------------------------------
def _make_proj_kernel(n_out):
    def kernel(*refs):
        x_ref = refs[0]
        w_refs = refs[1:1 + n_out]
        o_refs = refs[1 + n_out:1 + 2 * n_out]
        xb = x_ref[...].astype(jnp.bfloat16)          # bf16 MXU operand
        for w_ref, o_ref in zip(w_refs, o_refs):
            o_ref[...] = jnp.dot(
                xb, w_ref[...], preferred_element_type=jnp.float32
            ).astype(o_ref.dtype)
    return kernel


def pallas_proj(x2d, weights, *, out_dtype=jnp.bfloat16, tm_cap=512, tn_cap=1024):
    """Compute [x2d @ W for W in weights] with one pallas_call.

    Grid = (row tiles, lane tiles).  The X block index is constant over the
    inner lane axis, so X is not re-DMA'd per N tile; weights are tiled over N
    (multiples of 128) so they never need to be fully VMEM-resident.
    """
    M, K = x2d.shape
    N = weights[0].shape[1]
    n_out = len(weights)

    tm = _row_tile(M, tm_cap)
    Mp = _round_up(M, tm)
    if Mp != M:                                        # pad, never blow VMEM
        x2d = jnp.pad(x2d, ((0, Mp - M), (0, 0)))
    tn = _lane_tile(N, tn_cap)

    # TODO(synk): K (d_model) is left un-tiled; add a K grid axis + f32
    #             accumulator ("arbitrary") for very large d_model.
    est = (2 * tm * K * x2d.dtype.itemsize                         # x blocks
           + n_out * 2 * K * tn * 2                                # bf16 weights
           + n_out * 2 * tm * tn * jnp.dtype(out_dtype).itemsize)  # outputs

    outs = pl.pallas_call(
        _make_proj_kernel(n_out),
        out_shape=[jax.ShapeDtypeStruct((Mp, N), out_dtype) for _ in range(n_out)],
        grid=(Mp // tm, N // tn),
        in_specs=[pl.BlockSpec((tm, K), lambda i, j: (i, 0))]
                 + [pl.BlockSpec((K, tn), lambda i, j: (0, j)) for _ in range(n_out)],
        out_specs=[pl.BlockSpec((tm, tn), lambda i, j: (i, j)) for _ in range(n_out)],
        compiler_params=_mosaic_params(("parallel", "parallel"), est),
    )(x2d, *weights)

    if Mp != M:
        outs = [o[:M] for o in outs]
    return list(outs)


# ---------------------------------------------------------------------------
# Attention kernel: one grid step = (one batch, one q tile), all heads,
# with the output projection W_o fused in the epilogue.
# Q/K/V arrive packed as (1, tile, H*dh) bf16; heads are static lane slices.
# valid_seq_lens (B,) is scalar-prefetched into SMEM.
# ---------------------------------------------------------------------------
def _make_attention_kernel(num_heads, d_head):
    scale = 1.0 / math.sqrt(d_head)

    def kernel(vl_ref, q_ref, k_ref, v_ref, wo_ref, o_ref, acc_ref):
        b = pl.program_id(0)
        valid = vl_ref[b]

        q_all = q_ref[0]            # (tq , H*dh)  bf16
        k_all = k_ref[0]            # (S_k, H*dh)  bf16
        v_all = v_ref[0]            # (S_k, H*dh)  bf16
        tq = q_all.shape[0]
        s_k = k_all.shape[0]

        col = lax.broadcasted_iota(jnp.int32, (tq, s_k), 1)
        key_mask = col < valid      # same mask for every head of this batch

        for h in range(num_heads):  # static unroll over heads
            lo = h * d_head
            hi = lo + d_head
            q = q_all[:, lo:hi]
            k = k_all[:, lo:hi]
            v = v_all[:, lo:hi]

            # Contract head dims directly (no K transpose); bf16 MXU, f32 acc.
            s = lax.dot_general(
                q, k, dimension_numbers=(((1,), (1,)), ((), ())),
                preferred_element_type=jnp.float32) * scale
            s = jnp.where(key_mask, s, jnp.float32(-1000000.0))

            # Softmax in f32 (safe on v5e: no bf16 VPU/EUP); approx EUP recip.
            m = jnp.max(s, axis=-1, keepdims=True)
            e = jnp.exp(s - m)
            p = e * pl.reciprocal(jnp.sum(e, axis=-1, keepdims=True), approx=True)

            # Per-head PV lands in the f32 VMEM accumulator -- no masked
            # partial HBM stores per head.
            acc_ref[:, lo:hi] = jnp.dot(
                p.astype(jnp.bfloat16), v, preferred_element_type=jnp.float32)

        # Fused output projection + single dense lane-aligned writeback.
        o_ref[0] = jnp.dot(
            acc_ref[...].astype(jnp.bfloat16), wo_ref[...],
            preferred_element_type=jnp.float32).astype(o_ref.dtype)

    return kernel


def pallas_attention(q, k, v, w_o, valid_lens, num_heads, *,
                     tq_cap=256, out_dtype=jnp.float32):
    """q: (B, S_q, H*dh) bf16, k/v: (B, S_k, H*dh) bf16, w_o: (H*dh, H*dh) bf16,
    valid_lens: (B,) int32.  Returns (B, S_q, H*dh) f32 with heads merged and
    the output projection already applied."""
    B, S_q, NH = q.shape
    _, S_k, _ = k.shape
    assert NH % num_heads == 0
    d_head = NH // num_heads

    tq = _row_tile(S_q, tq_cap)
    Sp = _round_up(S_q, tq)
    if Sp != S_q:
        q = jnp.pad(q, ((0, 0), (0, Sp - S_q), (0, 0)))

    # TODO(synk): for long S_k add an inner "arbitrary" KV grid axis with
    #             flash-style online softmax so VMEM is independent of S_k.
    est = (2 * tq * NH * 2            # q blocks (bf16, double buffered)
           + 2 * 2 * S_k * NH * 2     # k + v blocks (bf16)
           + 2 * NH * NH * 2          # resident W_o (bf16)
           + 2 * tq * NH * 4          # output blocks (f32)
           + tq * NH * 4)             # accumulator scratch

    kernel = _make_attention_kernel(num_heads, d_head)
    out = pl.pallas_call(
        kernel,
        out_shape=jax.ShapeDtypeStruct((B, Sp, NH), out_dtype),
        grid_spec=pltpu.PrefetchScalarGridSpec(
            num_scalar_prefetch=1,
            grid=(B, Sp // tq),
            in_specs=[
                pl.BlockSpec((1, tq, NH), lambda b, qi, vl: (b, qi, 0)),
                pl.BlockSpec((1, S_k, NH), lambda b, qi, vl: (b, 0, 0)),
                pl.BlockSpec((1, S_k, NH), lambda b, qi, vl: (b, 0, 0)),
                pl.BlockSpec((NH, NH), lambda b, qi, vl: (0, 0)),   # W_o resident
            ],
            out_specs=pl.BlockSpec((1, tq, NH), lambda b, qi, vl: (b, qi, 0)),
            scratch_shapes=[pltpu.VMEM((tq, NH), jnp.float32)],
        ),
        compiler_params=_mosaic_params(("parallel", "parallel"), est),
    )(valid_lens, q, k, v, w_o)

    if Sp != S_q:
        out = out[:, :S_q]
    return out


# ---------------------------------------------------------------------------
# MultiHeadAttention wrapper (glue in plain JAX; hot paths in Pallas)
# ---------------------------------------------------------------------------
class MultiHeadAttentionPallas:
    def __init__(self, num_hiddens, num_heads, d_in, key, dropout=0.0):
        assert num_hiddens % num_heads == 0
        self.num_hiddens = num_hiddens
        self.num_heads = num_heads
        self.dropout = dropout  # identity in eval mode / dropout=0.0

        kq, kk, kv, ko = jax.random.split(key, 4)
        bi = 1.0 / math.sqrt(d_in)
        bh = 1.0 / math.sqrt(num_hiddens)

        def init(k, shape, bound):
            # Weights stored bf16 (MXU-native on v5e/v6e/v7x; halves VMEM/HBM).
            return jax.random.uniform(k, shape, jnp.float32,
                                      -bound, bound).astype(jnp.bfloat16)

        self.W_q = init(kq, (d_in, num_hiddens), bi)
        self.W_k = init(kk, (d_in, num_hiddens), bi)
        self.W_v = init(kv, (d_in, num_hiddens), bi)
        self.W_o = init(ko, (num_hiddens, num_hiddens), bh)

    def __call__(self, queries, keys, values, valid_seq_lens):
        B, S_q, D_q = queries.shape
        _, S_k, D_k = keys.shape
        NH = self.num_hiddens

        if queries is keys and keys is values:
            # Self-attention: X read once, three projections in one kernel.
            q2, k2, v2 = pallas_proj(queries.reshape(B * S_q, D_q),
                                     [self.W_q, self.W_k, self.W_v])
        else:
            # TODO(synk): fused path keys on Python `is` identity; equal-but-
            #             distinct arrays take the (correct) unfused path.
            (q2,) = pallas_proj(queries.reshape(B * S_q, D_q), [self.W_q])
            if keys is values:
                # Cross-attention over shared encoder output: fused K/V.
                k2, v2 = pallas_proj(keys.reshape(B * S_k, D_k),
                                     [self.W_k, self.W_v])
            else:
                (k2,) = pallas_proj(keys.reshape(B * S_k, D_k), [self.W_k])
                (v2,) = pallas_proj(values.reshape(B * S_k, values.shape[-1]),
                                    [self.W_v])
        q = q2.reshape(B, S_q, NH)
        k = k2.reshape(B, S_k, NH)
        v = v2.reshape(B, S_k, NH)

        if valid_seq_lens is None:
            vl = jnp.full((B,), S_k, dtype=jnp.int32)
        else:
            # TODO(synk): 2-D valid_seq_lens (per-query lengths) not supported.
            vl = valid_seq_lens.astype(jnp.int32)

        # Attention with head split/merge on the packed layout and W_o fused
        # in the kernel epilogue -> no extra (B, S_q, NH) HBM round trip.
        return pallas_attention(q, k, v, self.W_o, vl, self.num_heads)


# ---------------------------------------------------------------------------
# Pure-JAX f32 reference (correctness check; uses the same bf16 weight values)
# ---------------------------------------------------------------------------
def reference_mha(mha, queries, keys, values, valid_seq_lens):
    H = mha.num_heads
    B, S_q, _ = queries.shape
    _, S_k, _ = keys.shape
    Wq = mha.W_q.astype(jnp.float32)
    Wk = mha.W_k.astype(jnp.float32)
    Wv = mha.W_v.astype(jnp.float32)
    Wo = mha.W_o.astype(jnp.float32)

    def split(x):
        b, s, _ = x.shape
        return x.reshape(b, s, H, -1).transpose(0, 2, 1, 3)   # (B,H,S,dh)

    q = split(queries @ Wq)
    k = split(keys @ Wk)
    v = split(values @ Wv)
    d = q.shape[-1]
    scores = jnp.einsum("bhqd,bhkd->bhqk", q, k) / math.sqrt(d)
    if valid_seq_lens is not None:
        col = jnp.arange(S_k)[None, None, None, :]
        scores = jnp.where(col < valid_seq_lens[:, None, None, None],
                           scores, -1000000.0)
    w = jax.nn.softmax(scores, axis=-1)
    out = jnp.einsum("bhqk,bhkd->bhqd", w, v)
    out = out.transpose(0, 2, 1, 3).reshape(B, S_q, -1)
    return out @ Wo


if __name__ == "__main__":
    key = jax.random.PRNGKey(0)
    kparam, kx, kenc, kk2, kv2 = jax.random.split(key, 5)

    batch, seq, num_hiddens, num_heads = 2, 8, 32, 4
    mha = MultiHeadAttentionPallas(num_hiddens=num_hiddens,
                                   num_heads=num_heads,
                                   d_in=num_hiddens,
                                   key=kparam,
                                   dropout=0.0)

    # Tolerance absorbs bf16 MXU operands (activations cast to bf16 in the
    # kernel; the reference keeps activations in f32) and the approx (EUP)
    # reciprocal in the softmax denominator.
    ATOL = RTOL = 2e-2

    # 1) self-attention (fused QKV path) with key-length masking
    x = jax.random.normal(kx, (batch, seq, num_hiddens), jnp.float32)
    valid = jnp.array([3, 6], dtype=jnp.int32)
    out1 = jax.block_until_ready(mha(x, x, x, valid))
    ref1 = reference_mha(mha, x, x, x, valid)
    assert out1.shape == (batch, seq, num_hiddens)
    assert jnp.allclose(out1, ref1, atol=ATOL, rtol=RTOL), "mismatch (self-attn)"

    # 2) cross-attention (fused KV path), no mask, S_k != S_q
    seq_kv = 16
    enc = jax.random.normal(kenc, (batch, seq_kv, num_hiddens), jnp.float32)
    out2 = jax.block_until_ready(mha(x, enc, enc, None))
    ref2 = reference_mha(mha, x, enc, enc, None)
    assert jnp.allclose(out2, ref2, atol=ATOL, rtol=RTOL), "mismatch (cross-attn)"

    # 3) fully separate Q/K/V inputs with masking
    keys3 = jax.random.normal(kk2, (batch, seq_kv, num_hiddens), jnp.float32)
    vals3 = jax.random.normal(kv2, (batch, seq_kv, num_hiddens), jnp.float32)
    valid3 = jnp.array([5, 16], dtype=jnp.int32)
    out3 = jax.block_until_ready(mha(x, keys3, vals3, valid3))
    ref3 = reference_mha(mha, x, keys3, vals3, valid3)
    assert jnp.allclose(out3, ref3, atol=ATOL, rtol=RTOL), "mismatch (separate kv)"

    print("KERNEL_OK")
</pallas_src>

<mosaic_0001>
module attributes {stable_mosaic.version = 11 : i64} {
  func.func @kernel(%arg0: i32, %arg1: i32, %arg2: memref<16x32xf32, #tpu.memory_space<vmem>>, %arg3: memref<32x32xbf16, #tpu.memory_space<vmem>>, %arg4: memref<32x32xbf16, #tpu.memory_space<vmem>>, %arg5: memref<32x32xbf16, #tpu.memory_space<vmem>>, %arg6: memref<16x32xbf16, #tpu.memory_space<vmem>>, %arg7: memref<16x32xbf16, #tpu.memory_space<vmem>>, %arg8: memref<16x32xbf16, #tpu.memory_space<vmem>>) attributes {dimension_semantics = [#tpu.dimension_semantics<parallel>, #tpu.dimension_semantics<parallel>], iteration_bounds = array<i64: 1, 1>, scalar_prefetch = 0 : i64, scratch_operands = 0 : i64, tpu.core_type = #tpu.core_type<tc>, window_params = [{transform_indices = @transform_0, window_bounds = array<i64: 16, 32>}, {transform_indices = @transform_1, window_bounds = array<i64: 32, 32>}, {transform_indices = @transform_2, window_bounds = array<i64: 32, 32>}, {transform_indices = @transform_3, window_bounds = array<i64: 32, 32>}, {transform_indices = @transform_4, window_bounds = array<i64: 16, 32>}, {transform_indices = @transform_5, window_bounds = array<i64: 16, 32>}, {transform_indices = @transform_6, window_bounds = array<i64: 16, 32>}]} {
    %c0 = arith.constant 0 : index
    %c0_0 = arith.constant 0 : index
    %0 = vector.load %arg2[%c0, %c0_0] : memref<16x32xf32, #tpu.memory_space<vmem>>, vector<16x32xf32>
    %1 = arith.truncf %0 : vector<16x32xf32> to vector<16x32xbf16>
    %c0_1 = arith.constant 0 : index
    %c0_2 = arith.constant 0 : index
    %2 = vector.load %arg3[%c0_1, %c0_2] : memref<32x32xbf16, #tpu.memory_space<vmem>>, vector<32x32xbf16>
    %cst = arith.constant dense<0.000000e+00> : vector<16x32xf32>
    %3 = tpu.matmul %1, %2, %cst {dimension_numbers = #tpu.dot_dimension_numbers<[1], [0], [0], [1], [0, 0, 1, 1], [], []>} : vector<16x32xbf16>, vector<32x32xbf16>, vector<16x32xf32> -> vector<16x32xf32>
    %4 = arith.truncf %3 : vector<16x32xf32> to vector<16x32xbf16>
    %c0_3 = arith.constant 0 : index
    %c0_4 = arith.constant 0 : index
    %5 = vector.load %arg6[%c0_3, %c0_4] : memref<16x32xbf16, #tpu.memory_space<vmem>>, vector<16x32xbf16>
    tpu.vector_store %arg6[%c0_3, %c0_4], %4 {strides = array<i32>} : memref<16x32xbf16, #tpu.memory_space<vmem>>, vector<16x32xbf16>,
    %c0_5 = arith.constant 0 : index
    %c0_6 = arith.constant 0 : index
    %6 = vector.load %arg4[%c0_5, %c0_6] : memref<32x32xbf16, #tpu.memory_space<vmem>>, vector<32x32xbf16>
    %cst_7 = arith.constant dense<0.000000e+00> : vector<16x32xf32>
    %7 = tpu.matmul %1, %6, %cst_7 {dimension_numbers = #tpu.dot_dimension_numbers<[1], [0], [0], [1], [0, 0, 1, 1], [], []>} : vector<16x32xbf16>, vector<32x32xbf16>, vector<16x32xf32> -> vector<16x32xf32>
    %8 = arith.truncf %7 : vector<16x32xf32> to vector<16x32xbf16>
    %c0_8 = arith.constant 0 : index
    %c0_9 = arith.constant 0 : index
    %9 = vector.load %arg7[%c0_8, %c0_9] : memref<16x32xbf16, #tpu.memory_space<vmem>>, vector<16x32xbf16>
    tpu.vector_store %arg7[%c0_8, %c0_9], %8 {strides = array<i32>} : memref<16x32xbf16, #tpu.memory_space<vmem>>, vector<16x32xbf16>,
    %c0_10 = arith.constant 0 : index
    %c0_11 = arith.constant 0 : index
    %10 = vector.load %arg5[%c0_10, %c0_11] : memref<32x32xbf16, #tpu.memory_space<vmem>>, vector<32x32xbf16>
    %cst_12 = arith.constant dense<0.000000e+00> : vector<16x32xf32>
    %11 = tpu.matmul %1, %10, %cst_12 {dimension_numbers = #tpu.dot_dimension_numbers<[1], [0], [0], [1], [0, 0, 1, 1], [], []>} : vector<16x32xbf16>, vector<32x32xbf16>, vector<16x32xf32> -> vector<16x32xf32>
    %12 = arith.truncf %11 : vector<16x32xf32> to vector<16x32xbf16>
    %c0_13 = arith.constant 0 : index
    %c0_14 = arith.constant 0 : index
    %13 = vector.load %arg8[%c0_13, %c0_14] : memref<16x32xbf16, #tpu.memory_space<vmem>>, vector<16x32xbf16>
    tpu.vector_store %arg8[%c0_13, %c0_14], %12 {strides = array<i32>} : memref<16x32xbf16, #tpu.memory_space<vmem>>, vector<16x32xbf16>,
    return
  }
  func.func @transform_0(%arg0: i32, %arg1: i32) -> (i32, i32) {
    %c0_i32 = arith.constant 0 : i32
    %c0_i32_0 = arith.constant 0 : i32
    return %arg0, %c0_i32 : i32, i32
  }
  func.func @transform_1(%arg0: i32, %arg1: i32) -> (i32, i32) {
    %c0_i32 = arith.constant 0 : i32
    %c0_i32_0 = arith.constant 0 : i32
    return %c0_i32, %arg1 : i32, i32
  }
  func.func @transform_2(%arg0: i32, %arg1: i32) -> (i32, i32) {
    %c0_i32 = arith.constant 0 : i32
    %c0_i32_0 = arith.constant 0 : i32
    return %c0_i32, %arg1 : i32, i32
  }
  func.func @transform_3(%arg0: i32, %arg1: i32) -> (i32, i32) {
    %c0_i32 = arith.constant 0 : i32
    %c0_i32_0 = arith.constant 0 : i32
    return %c0_i32, %arg1 : i32, i32
  }
  func.func @transform_4(%arg0: i32, %arg1: i32) -> (i32, i32) {
    %c0_i32 = arith.constant 0 : i32
    return %arg0, %arg1 : i32, i32
  }
  func.func @transform_5(%arg0: i32, %arg1: i32) -> (i32, i32) {
    %c0_i32 = arith.constant 0 : i32
    return %arg0, %arg1 : i32, i32
  }
  func.func @transform_6(%arg0: i32, %arg1: i32) -> (i32, i32) {
    %c0_i32 = arith.constant 0 : i32
    return %arg0, %arg1 : i32, i32
  }
}

</mosaic_0001>

<llo_original>
// kernel: tpu_custom_call.1
$region0: #{tpu_custom_call.1}
  #allocation0 [shape = 'u32[]', space=smem, size = 0x4, offset = 0x4, fixed_abs, tag = 'smem constant byte address 0x4 - core index']
  #allocation1 [shape = 'u32[144,128]{1,0:T(1,128)}', space=vmem, size = 0x12000, scoped, tag = 'internal scratch']
  %s0 = inlined_call_operand.hbm [shape: f32[16,32], index: 0, kind: input, shape index: {}]
  %s1 = inlined_call_operand.hbm [shape: bf16[32,32], index: 1, kind: input, shape index: {}]
  %s2 = inlined_call_operand.hbm [shape: bf16[32,32], index: 2, kind: input, shape index: {}]
  %s3 = inlined_call_operand.hbm [shape: bf16[32,32], index: 3, kind: input, shape index: {}]
  %s4 = inlined_call_operand.hbm [shape: bf16[16,32], index: 4, kind: output, shape index: {0}]
  %s5 = inlined_call_operand.hbm [shape: bf16[16,32], index: 5, kind: output, shape index: {1}]
  %s6 = inlined_call_operand.hbm [shape: bf16[16,32], index: 6, kind: output, shape index: {2}]
  %7 = xla_tuple %s4, %s5, %s6
  %s8 = sld [smem:[#allocation0]]
  $region58: #{tpu_custom_call.1} parent=0
    _
  %s10 = ssub.s32 1, %s8
  %s11 = scalar_select 0, %s10, %s8
  $region1: #{tpu_custom_call.1} parent=0
    #allocation2 [shape = 'u8[8192]{0}', space=vmem, size = 0x2000, scoped, tag = 'input window, operand 0, single buffered']
    #allocation3 [shape = 's32[1]{0}', space=sflag, size = 0x4, scoped, tag = 'scoped memory for tpu_custom_call.1']
    #allocation4 [shape = 's32[1]{0}', space=sflag, size = 0x4, scoped, tag = 'scoped memory for tpu_custom_call.1']
    #allocation5 [shape = 'u8[8192]{0}', space=vmem, size = 0x2000, scoped, tag = 'input window, operand 1, single buffered']
    #allocation6 [shape = 's32[1]{0}', space=sflag, size = 0x4, scoped, tag = 'scoped memory for tpu_custom_call.1']
    #allocation7 [shape = 'u8[8192]{0}', space=vmem, size = 0x2000, scoped, tag = 'input window, operand 2, single buffered']
    #allocation8 [shape = 'u8[8192]{0}', space=vmem, size = 0x2000, scoped, tag = 'input window, operand 3, single buffered']
    #allocation9 [shape = 's32[1]{0}', space=sflag, size = 0x4, scoped, tag = 'scoped memory for tpu_custom_call.1']
    #allocation10 [shape = 'u8[4096]{0}', space=vmem, size = 0x1000, scoped, tag = 'output window, operand 0, single buffered']
    #allocation11 [shape = 'u8[4096]{0}', space=vmem, size = 0x1000, scoped, tag = 'output window, operand 1, single buffered']
    #allocation12 [shape = 's32[1]{0}', space=sflag, size = 0x4, scoped, tag = 'scoped memory for tpu_custom_call.1']
    #allocation13 [shape = 'u8[4096]{0}', space=vmem, size = 0x1000, scoped, tag = 'output window, operand 2, single buffered']
    %12 = vsyncpa [#allocation3], 0
    %13 = vsyncpa [#allocation6], 0
    %14 = vsyncpa [#allocation9], 0
    %15 = vsyncpa [#allocation4], 0
    %16 = vsyncpa [#allocation12], 0
    // Predicated region
    $region2: #{tpu_custom_call.1} parent=1 // pred_check
      _
    $region3: #{tpu_custom_call.1} parent=1 // pred_check_branch
      %18 = sbr.rel (0) target = $region5
    $region4: #{tpu_custom_call.1} parent=1 // pred_region
      %s20 = ssub.s32 256, 256
      %21 = vsyncadd [#allocation3], %s20
      %s22 = sshll.u32 [#allocation2], 4
      %s23 = int_to_ptr.vmem [resolvable:$true] %s22
      %28 = dma.hbm_to_vmem [thread:$0]  %s0, 256, %s23, [#allocation3], 128, 128, 8
    $region5: #{tpu_custom_call.1} parent=1 // pred_fallthru
      _
    // Predicated region
    $region6: #{tpu_custom_call.1} parent=1 // pred_check
      _
    $region7: #{tpu_custom_call.1} parent=1 // pred_check_branch
      %30 = sbr.rel (0) target = $region9
    $region8: #{tpu_custom_call.1} parent=1 // pred_region
      %s32 = ssub.s32 256, 256
      %33 = vsyncadd [#allocation6], %s32
      %s34 = sshll.u32 [#allocation5], 4
      %s35 = int_to_ptr.vmem [resolvable:$true] %s34
      %40 = dma.hbm_to_vmem [thread:$0]  %s1, 256, %s35, [#allocation6], 64, 64, 4
    $region9: #{tpu_custom_call.1} parent=1 // pred_fallthru
      _
    // Predicated region
    $region10: #{tpu_custom_call.1} parent=1 // pred_check
      _
    $region11: #{tpu_custom_call.1} parent=1 // pred_check_branch
      %42 = sbr.rel (0) target = $region13
    $region12: #{tpu_custom_call.1} parent=1 // pred_region
      %s44 = ssub.s32 256, 256
      %45 = vsyncadd [#allocation6], %s44
      %s46 = sshll.u32 [#allocation7], 4
      %s47 = int_to_ptr.vmem [resolvable:$true] %s46
      %52 = dma.hbm_to_vmem [thread:$0]  %s2, 256, %s47, [#allocation6], 64, 64, 4
    $region13: #{tpu_custom_call.1} parent=1 // pred_fallthru
      _
    // Predicated region
    $region14: #{tpu_custom_call.1} parent=1 // pred_check
      _
    $region15: #{tpu_custom_call.1} parent=1 // pred_check_branch
      %54 = sbr.rel (0) target = $region17
    $region16: #{tpu_custom_call.1} parent=1 // pred_region
      %s56 = ssub.s32 256, 256
      %57 = vsyncadd [#allocation9], %s56
      %s58 = sshll.u32 [#allocation8], 4
      %s59 = int_to_ptr.vmem [resolvable:$true] %s58
      %64 = dma.hbm_to_vmem [thread:$0]  %s3, 256, %s59, [#allocation9], 64, 64, 4
    $region17: #{tpu_custom_call.1} parent=1 // pred_fallthru
      _
    // Predicated region
    $region18: #{tpu_custom_call.1} parent=1 // pred_check
      _
    $region19: #{tpu_custom_call.1} parent=1 // pred_check_branch
      %66 = sbr.rel (0) target = $region21
    $region20: #{tpu_custom_call.1} parent=1 // pred_region
      %67 = dma.done [#allocation3], 256
    $region21: #{tpu_custom_call.1} parent=1 // pred_fallthru
      _
    // Predicated region
    $region22: #{tpu_custom_call.1} parent=1 // pred_check
      _
    $region23: #{tpu_custom_call.1} parent=1 // pred_check_branch
      %69 = sbr.rel (0) target = $region25
    $region24: #{tpu_custom_call.1} parent=1 // pred_region
      %70 = dma.done [#allocation6], 256
    $region25: #{tpu_custom_call.1} parent=1 // pred_fallthru
      _
    // Predicated region
    $region26: #{tpu_custom_call.1} parent=1 // pred_check
      _
    $region27: #{tpu_custom_call.1} parent=1 // pred_check_branch
      %72 = sbr.rel (0) target = $region29
    $region28: #{tpu_custom_call.1} parent=1 // pred_region
      %73 = dma.done [#allocation6], 256
    $region29: #{tpu_custom_call.1} parent=1 // pred_fallthru
      _
    // Predicated region
    $region30: #{tpu_custom_call.1} parent=1 // pred_check
      _
    $region31: #{tpu_custom_call.1} parent=1 // pred_check_branch
      %75 = sbr.rel (0) target = $region33
    $region32: #{tpu_custom_call.1} parent=1 // pred_region
      %76 = dma.done [#allocation9], 256
    $region33: #{tpu_custom_call.1} parent=1 // pred_fallthru
      _
    %v78 = vld [vmem:[#allocation2] sm:$0xff]
    %v79 = vld [vmem:[#allocation2 + $0x8] sm:$0xff]
    %v80 = vpack.c.bf16 %v79, %v78
    %v81 = vld [vmem:[#allocation5] sm:$0xf]
    %v82 = vld [vmem:[#allocation5 + $0x4] sm:$0xf]
    %v83 = vld [vmem:[#allocation5 + $0x8] sm:$0xf]
    %v84 = vld [vmem:[#allocation5 + $0xc] sm:$0xf]
    %v89 = vunpack.c.l.b16 %v81
    %v90 = vunpack.c.l.b16 %v82
    %v91 = vunpack.c.l.b16 %v83
    %v92 = vunpack.c.l.b16 %v84
    %v93 = vpack.c.b16 %v90, %v89
    %v94 = vpack.c.b16 %v92, %v91
    %vm97 = vcmask 261120
    %v99 = vsel %vm97, %v80, 0
    %101 = vmatprep.subr.bf16.mxu0 0
    %102 = vmatpush1.bf16.msra.mxu0 %v93
    %103 = vmatprep.subr.bf16.mxu0 0
    %104 = vmatpush1.bf16.msra.mxu0 %v94
    %105 = vmatprep.subr.bf16.mxu0 0
    %106 = vmatpush1.bf16.msra.mxu0 0
    %107 = vmatprep.subr.bf16.mxu0 0
    %108 = vmatpush1.bf16.msra.mxu0 0
    %109 = vmatprep.subr.bf16.mxu0 0
    %110 = vmatpush1.bf16.msra.mxu0 0
    %111 = vmatprep.subr.bf16.mxu0 0
    %112 = vmatpush1.bf16.msra.mxu0 0
    %113 = vmatprep.subr.bf16.mxu0 0
    %114 = vmatpush1.bf16.msra.mxu0 0
    %115 = vmatprep.subr.bf16.mxu0 0
    %116 = vmatpush1.bf16.msra.mxu0 0
    %117 = vmatprep.subr.bf16.mxu0 0
    %118 = vmatpush1.bf16.msra.mxu0 0
    %119 = vmatprep.subr.bf16.mxu0 0
    %120 = vmatpush1.bf16.msra.mxu0 0
    %121 = vmatprep.subr.bf16.mxu0 0
    %122 = vmatpush1.bf16.msra.mxu0 0
    %123 = vmatprep.subr.bf16.mxu0 0
    %124 = vmatpush1.bf16.msra.mxu0 0
    %125 = vmatprep.subr.bf16.mxu0 0
    %126 = vmatpush1.bf16.msra.mxu0 0
    %127 = vmatprep.subr.bf16.mxu0 0
    %128 = vmatpush1.bf16.msra.mxu0 0
    %129 = vmatprep.subr.bf16.mxu0 0
    %130 = vmatpush1.bf16.msra.mxu0 0
    %131 = vmatprep.subr.bf16.mxu0 0
    %132 = vmatpush1.bf16.msra.mxu0 0
    %133 = vmatprep.mubr.bf16.mxu0 0
    %134 = vmatmul.mubr.bf16.gmra.mrb[0].mxu0 %v99
    %v135 = vpop.f32.mrb[0].mxu0
    %v136 = vadd.f32 0.0, %v135
    %v137 = vpop.f32.mrb[0].mxu0
    %v138 = vpop.f32.mrb[0].mxu0
    %v139 = vadd.f32 0.0, %v138
    %v140 = vpop.f32.mrb[0].mxu0
    %141 = vdwg.mxu0
    %v142 = vpack.c.bf16 %v139, %v136
    %v144 = vunpack.c.l.b16 %v142
    %v145 = vunpack.c.h.b16 %v142
    %v146 = vpack.c.b16 %v144, %v144
    %v147 = vpack.c.b16 %v145, %v145
    %vm150 = vcmask 257024
    %151 = vst.msk [vmem:[#allocation10] sm:$0xf] %vm150, %v146
    %152 = vst.msk [vmem:[#allocation10 + $0x4] sm:$0xf] %vm150, %v147
    %v153 = vld [vmem:[#allocation7] sm:$0xf]
    %v154 = vld [vmem:[#allocation7 + $0x4] sm:$0xf]
    %v155 = vld [vmem:[#allocation7 + $0x8] sm:$0xf]
    %v156 = vld [vmem:[#allocation7 + $0xc] sm:$0xf]
    %v161 = vunpack.c.l.b16 %v153
    %v162 = vunpack.c.l.b16 %v154
    %v163 = vunpack.c.l.b16 %v155
    %v164 = vunpack.c.l.b16 %v156
    %v165 = vpack.c.b16 %v162, %v161
    %v166 = vpack.c.b16 %v164, %v163
    %169 = vmatprep.subr.bf16.mxu0 0
    %170 = vmatpush1.bf16.msra.mxu0 %v165
    %171 = vmatprep.subr.bf16.mxu0 0
    %172 = vmatpush1.bf16.msra.mxu0 %v166
    %173 = vmatprep.subr.bf16.mxu0 0
    %174 = vmatpush1.bf16.msra.mxu0 0
    %175 = vmatprep.subr.bf16.mxu0 0
    %176 = vmatpush1.bf16.msra.mxu0 0
    %177 = vmatprep.subr.bf16.mxu0 0
    %178 = vmatpush1.bf16.msra.mxu0 0
    %179 = vmatprep.subr.bf16.mxu0 0
    %180 = vmatpush1.bf16.msra.mxu0 0
    %181 = vmatprep.subr.bf16.mxu0 0
    %182 = vmatpush1.bf16.msra.mxu0 0
    %183 = vmatprep.subr.bf16.mxu0 0
    %184 = vmatpush1.bf16.msra.mxu0 0
    %185 = vmatprep.subr.bf16.mxu0 0
    %186 = vmatpush1.bf16.msra.mxu0 0
    %187 = vmatprep.subr.bf16.mxu0 0
    %188 = vmatpush1.bf16.msra.mxu0 0
    %189 = vmatprep.subr.bf16.mxu0 0
    %190 = vmatpush1.bf16.msra.mxu0 0
    %191 = vmatprep.subr.bf16.mxu0 0
    %192 = vmatpush1.bf16.msra.mxu0 0
    %193 = vmatprep.subr.bf16.mxu0 0
    %194 = vmatpush1.bf16.msra.mxu0 0
    %195 = vmatprep.subr.bf16.mxu0 0
    %196 = vmatpush1.bf16.msra.mxu0 0
    %197 = vmatprep.subr.bf16.mxu0 0
    %198 = vmatpush1.bf16.msra.mxu0 0
    %199 = vmatprep.subr.bf16.mxu0 0
    %200 = vmatpush1.bf16.msra.mxu0 0
    %201 = vmatprep.mubr.bf16.mxu0 0
    %202 = vmatmul.mubr.bf16.gmra.mrb[0].mxu0 %v99
    %v203 = vpop.f32.mrb[0].mxu0
    %v204 = vadd.f32 0.0, %v203
    %v205 = vpop.f32.mrb[0].mxu0
    %v206 = vpop.f32.mrb[0].mxu0
    %v207 = vadd.f32 0.0, %v206
    %v208 = vpop.f32.mrb[0].mxu0
    %209 = vdwg.mxu0
    %v210 = vpack.c.bf16 %v207, %v204
    %v212 = vunpack.c.l.b16 %v210
    %v213 = vunpack.c.h.b16 %v210
    %v214 = vpack.c.b16 %v212, %v212
    %v215 = vpack.c.b16 %v213, %v213
    %218 = vst.msk [vmem:[#allocation11] sm:$0xf] %vm150, %v214
    %219 = vst.msk [vmem:[#allocation11 + $0x4] sm:$0xf] %vm150, %v215
    %v220 = vld [vmem:[#allocation8] sm:$0xf]
    %v221 = vld [vmem:[#allocation8 + $0x4] sm:$0xf]
    %v222 = vld [vmem:[#allocation8 + $0x8] sm:$0xf]
    %v223 = vld [vmem:[#allocation8 + $0xc] sm:$0xf]
    %v228 = vunpack.c.l.b16 %v220
    %v229 = vunpack.c.l.b16 %v221
    %v230 = vunpack.c.l.b16 %v222
    %v231 = vunpack.c.l.b16 %v223
    %v232 = vpack.c.b16 %v229, %v228
    %v233 = vpack.c.b16 %v231, %v230
    %236 = vmatprep.subr.bf16.mxu0 0
    %237 = vmatpush1.bf16.msra.mxu0 %v232
    %238 = vmatprep.subr.bf16.mxu0 0
    %239 = vmatpush1.bf16.msra.mxu0 %v233
    %240 = vmatprep.subr.bf16.mxu0 0
    %241 = vmatpush1.bf16.msra.mxu0 0
    %242 = vmatprep.subr.bf16.mxu0 0
    %243 = vmatpush1.bf16.msra.mxu0 0
    %244 = vmatprep.subr.bf16.mxu0 0
    %245 = vmatpush1.bf16.msra.mxu0 0
    %246 = vmatprep.subr.bf16.mxu0 0
    %247 = vmatpush1.bf16.msra.mxu0 0
    %248 = vmatprep.subr.bf16.mxu0 0
    %249 = vmatpush1.bf16.msra.mxu0 0
    %250 = vmatprep.subr.bf16.mxu0 0
    %251 = vmatpush1.bf16.msra.mxu0 0
    %252 = vmatprep.subr.bf16.mxu0 0
    %253 = vmatpush1.bf16.msra.mxu0 0
    %254 = vmatprep.subr.bf16.mxu0 0
    %255 = vmatpush1.bf16.msra.mxu0 0
    %256 = vmatprep.subr.bf16.mxu0 0
    %257 = vmatpush1.bf16.msra.mxu0 0
    %258 = vmatprep.subr.bf16.mxu0 0
    %259 = vmatpush1.bf16.msra.mxu0 0
    %260 = vmatprep.subr.bf16.mxu0 0
    %261 = vmatpush1.bf16.msra.mxu0 0
    %262 = vmatprep.subr.bf16.mxu0 0
    %263 = vmatpush1.bf16.msra.mxu0 0
    %264 = vmatprep.subr.bf16.mxu0 0
    %265 = vmatpush1.bf16.msra.mxu0 0
    %266 = vmatprep.subr.bf16.mxu0 0
    %267 = vmatpush1.bf16.msra.mxu0 0
    %268 = vmatprep.mubr.bf16.mxu0 0
    %269 = vmatmul.mubr.bf16.gmra.mrb[0].mxu0 %v99
    %v270 = vpop.f32.mrb[0].mxu0
    %v271 = vadd.f32 0.0, %v270
    %v272 = vpop.f32.mrb[0].mxu0
    %v273 = vpop.f32.mrb[0].mxu0
    %v274 = vadd.f32 0.0, %v273
    %v275 = vpop.f32.mrb[0].mxu0
    %276 = vdwg.mxu0
    %v277 = vpack.c.bf16 %v274, %v271
    %v279 = vunpack.c.l.b16 %v277
    %v280 = vunpack.c.h.b16 %v277
    %v281 = vpack.c.b16 %v279, %v279
    %v282 = vpack.c.b16 %v280, %v280
    %285 = vst.msk [vmem:[#allocation13] sm:$0xf] %vm150, %v281
    %286 = vst.msk [vmem:[#allocation13 + $0x4] sm:$0xf] %vm150, %v282
    // Predicated region
    $region34: #{tpu_custom_call.1} parent=1 // pred_check
      _
    $region35: #{tpu_custom_call.1} parent=1 // pred_check_branch
      %288 = sbr.rel (0) target = $region37
    $region36: #{tpu_custom_call.1} parent=1 // pred_region
      %s290 = ssub.s32 128, 128
      %291 = vsyncadd [#allocation4], %s290
      %s292 = sshll.u32 [#allocation10], 4
      %s293 = int_to_ptr.vmem [resolvable:$true] %s292
      %298 = dma.vmem_to_hbm [thread:$0]  %s293, 128, %s4, [#allocation4], 64, 64, 4
    $region37: #{tpu_custom_call.1} parent=1 // pred_fallthru
      _
    // Predicated region
    $region38: #{tpu_custom_call.1} parent=1 // pred_check
      _
    $region39: #{tpu_custom_call.1} parent=1 // pred_check_branch
      %300 = sbr.rel (0) target = $region41
    $region40: #{tpu_custom_call.1} parent=1 // pred_region
      %s302 = ssub.s32 128, 128
      %303 = vsyncadd [#allocation12], %s302
      %s304 = sshll.u32 [#allocation11], 4
      %s305 = int_to_ptr.vmem [resolvable:$true] %s304
      %310 = dma.vmem_to_hbm [thread:$0]  %s305, 128, %s5, [#allocation12], 64, 64, 4
    $region41: #{tpu_custom_call.1} parent=1 // pred_fallthru
      _
    // Predicated region
    $region42: #{tpu_custom_call.1} parent=1 // pred_check
      _
    $region43: #{tpu_custom_call.1} parent=1 // pred_check_branch
      %312 = sbr.rel (0) target = $region45
    $region44: #{tpu_custom_call.1} parent=1 // pred_region
      %s314 = ssub.s32 128, 128
      %315 = vsyncadd [#allocation12], %s314
      %s316 = sshll.u32 [#allocation13], 4
      %s317 = int_to_ptr.vmem [resolvable:$true] %s316
      %322 = dma.vmem_to_hbm [thread:$0]  %s317, 128, %s6, [#allocation12], 64, 64, 4
    $region45: #{tpu_custom_call.1} parent=1 // pred_fallthru
      _
    // Predicated region
    $region46: #{tpu_custom_call.1} parent=1 // pred_check
      _
    $region47: #{tpu_custom_call.1} parent=1 // pred_check_branch
      %324 = sbr.rel (0) target = $region49
    $region48: #{tpu_custom_call.1} parent=1 // pred_region
      %325 = dma.done [#allocation4], 128
    $region49: #{tpu_custom_call.1} parent=1 // pred_fallthru
      _
    // Predicated region
    $region50: #{tpu_custom_call.1} parent=1 // pred_check
      _
    $region51: #{tpu_custom_call.1} parent=1 // pred_check_branch
      %327 = sbr.rel (0) target = $region53
    $region52: #{tpu_custom_call.1} parent=1 // pred_region
      %328 = dma.done [#allocation12], 128
    $region53: #{tpu_custom_call.1} parent=1 // pred_fallthru
      _
    // Predicated region
    $region54: #{tpu_custom_call.1} parent=1 // pred_check
      _
    $region55: #{tpu_custom_call.1} parent=1 // pred_check_branch
      %330 = sbr.rel (0) target = $region57
    $region56: #{tpu_custom_call.1} parent=1 // pred_region
      %331 = dma.done [#allocation12], 128
    $region57: #{tpu_custom_call.1} parent=1 // pred_fallthru
      _
    %332 = vsyncpa [#allocation3], 1
    %333 = vsyncpa [#allocation6], 1
    %334 = vsyncpa [#allocation9], 1
    %335 = vsyncpa [#allocation4], 1
    %336 = vsyncpa [#allocation12], 1

</llo_original>
